<compile_context>
chip_gen: v6e
topology: v6e:2x2x1
jax: 0.10.0
libtpu: 0.0.40
codegen_flags: <defaults>
</compile_context>

<pallas_src>
import jax
import jax.numpy as jnp
from jax.experimental import pallas as pl
from jax.experimental.pallas import tpu as pltpu

_SMALL_PROBLEM_BYTES = 4 << 20   # below this, plain XLA wins (nothing to pipeline)
_MAX_VMEM_BUDGET = 48 << 20      # never plan for more than ~48 MiB of working set


def _pos_embed_kernel(row0_ref, pos_tail_ref, emb_ref, out_ref):
    # row0_ref:     (TB, H)        cls_token + pos[0], pre-replicated (resident)
    # pos_tail_ref: (1, N*H)       position_embeddings[:, 1:, :] flattened (resident)
    # emb_ref:      (TB, N*H)      patch embeddings for this batch tile
    # out_ref:      (TB, (N+1)*H)  output for this batch tile
    h = row0_ref.shape[1]
    out_ref[:, :h] = row0_ref[...]                       # plain aligned copy (cls row)
    out_ref[:, h:] = emb_ref[...] + pos_tail_ref[...]    # lane-aligned bulk add (offset H, H % 128 == 0)


def _vmem_capacity_bytes():
    try:
        cap = getattr(pltpu.get_tpu_info(), "vmem_capacity_bytes", None)
        if cap:
            return int(cap)
    except Exception:
        pass
    return 64 << 20  # conservative default (v7x per-TensorCore VMEM)


def _footprint_bytes(tb, num_patches, hidden, itemsize):
    # Streamed per grid step, double-buffered by the pipeline: emb tile + out tile.
    streamed = 2 * tb * (2 * num_patches + 1) * hidden * itemsize
    # Resident blocks (pos tail + pre-replicated cls row). Counted double-buffered
    # so the plan still fits even if single-buffering (pl.Buffered(1)) is unavailable.
    resident = 2 * (num_patches * hidden + tb * hidden) * itemsize
    return streamed + resident


def _pick_batch_tile(batch, num_patches, hidden, itemsize, vmem_budget_bytes):
    """Pick batch tile TB. Returns (TB, footprint_bytes), or (None, None) if even
    the minimal layout-legal tile does not fit the budget."""
    sublane = {4: 8, 2: 16, 1: 32}.get(itemsize, 8)
    tb_min = min(batch, sublane)  # full-dim or sublane-quantum block: always layout-legal
    if _footprint_bytes(tb_min, num_patches, hidden, itemsize) > vmem_budget_bytes:
        return None, None
    tb = tb_min
    while tb * 2 <= batch and _footprint_bytes(tb * 2, num_patches, hidden, itemsize) <= vmem_budget_bytes:
        tb *= 2
    # Keep >= 2 grid steps when the batch allows, so dimension_semantics=("parallel",)
    # can shard the grid across both TensorCores on v7x (harmless on v5e/v6e).
    if batch >= 2 * tb_min:
        tb = min(tb, max(tb_min, ((batch // 2) // tb_min) * tb_min))
    return tb, _footprint_bytes(tb, num_patches, hidden, itemsize)


def _pallas_forward(row0_tile, pos_tail, emb_flat, B, N, H, TB, dtype,
                    vmem_limit, single_buffer_invariants):
    invariant_kwargs = {}
    if single_buffer_invariants and hasattr(pl, "Buffered"):
        # Invariant (constant index_map) inputs: one VMEM buffer is enough.
        invariant_kwargs = dict(pipeline_mode=pl.Buffered(1))
    return pl.pallas_call(
        _pos_embed_kernel,
        out_shape=jax.ShapeDtypeStruct((B, (N + 1) * H), dtype),
        grid_spec=pl.GridSpec(
            grid=(pl.cdiv(B, TB),),
            in_specs=[
                pl.BlockSpec((TB, H), lambda b: (0, 0), **invariant_kwargs),     # cls row (resident)
                pl.BlockSpec((1, N * H), lambda b: (0, 0), **invariant_kwargs),  # pos tail (resident)
                pl.BlockSpec((TB, N * H), lambda b: (b, 0)),                     # patch embeddings
            ],
            out_specs=pl.BlockSpec((TB, (N + 1) * H), lambda b: (b, 0)),
        ),
        compiler_params=pltpu.CompilerParams(
            dimension_semantics=("parallel",),
            vmem_limit_bytes=vmem_limit,
        ),
    )(row0_tile, pos_tail, emb_flat)


def position_embedding(embeddings, cls_token, position_embeddings, *,
                       batch_tile=None, force_kernel=False):
    """embeddings: (B, N, H); cls_token: (1, 1, H); position_embeddings: (1, N+1, H)."""
    B, N, H = embeddings.shape
    assert cls_token.shape == (1, 1, H)
    assert position_embeddings.shape == (1, N + 1, H)
    dtype = embeddings.dtype
    itemsize = jnp.dtype(dtype).itemsize

    def xla_path():
        cls = jnp.broadcast_to(cls_token, (B, 1, H)).astype(dtype)
        return (jnp.concatenate([cls, embeddings], axis=1) + position_embeddings).astype(dtype)

    # Lane-misaligned hidden size would turn the whole bulk store into masked
    # shifted vst; keep it correct via XLA instead.
    # TODO(synk): add a 3-D (TB, N+1, H) kernel variant (or pad H) for H % 128 != 0.
    if H % 128 != 0:
        return xla_path()

    # Tiny problems: a single-step pallas_call only adds fixed launch overhead.
    if not force_kernel and B * (N + 1) * H * itemsize < _SMALL_PROBLEM_BYTES:
        return xla_path()

    vmem_cap = _vmem_capacity_bytes()
    vmem_budget = min(_MAX_VMEM_BUDGET, int(vmem_cap * 0.7))
    if batch_tile is not None:
        TB = batch_tile
        footprint = _footprint_bytes(TB, N, H, itemsize)
    else:
        TB, footprint = _pick_batch_tile(B, N, H, itemsize, vmem_budget)
        if TB is None:
            # Even the minimal tile overflows the budget (pathologically large N*H).
            # TODO(synk): split the flattened lane dim with a second grid axis here.
            return xla_path()
    vmem_limit = int(min(vmem_cap * 0.9, max(32 << 20, footprint + (4 << 20))))

    # Hoisted, batch-independent prep (tiny, plain XLA, runs once).
    row0 = (cls_token[:, 0, :] + position_embeddings[:, 0, :]).astype(dtype)    # (1, H)
    row0_tile = jnp.broadcast_to(row0, (TB, H))                                 # (TB, H) resident
    pos_tail = position_embeddings[:, 1:, :].reshape(1, N * H).astype(dtype)    # (1, N*H) resident
    emb_flat = embeddings.reshape(B, N * H)                                     # free contiguous reshape

    try:
        out_flat = _pallas_forward(row0_tile, pos_tail, emb_flat, B, N, H, TB, dtype,
                                   vmem_limit, single_buffer_invariants=True)
    except Exception:
        # pipeline_mode=pl.Buffered(1) not supported by this jax/libtpu build:
        # retry with default double buffering (footprint was budgeted for this case).
        out_flat = _pallas_forward(row0_tile, pos_tail, emb_flat, B, N, H, TB, dtype,
                                   vmem_limit, single_buffer_invariants=False)

    return out_flat.reshape(B, N + 1, H)


if __name__ == "__main__":
    # Small shapes: batch=16 (so the batch grid actually has >=2 steps),
    # num_patches=8, hidden=128 (lane-aligned H).
    B, N, H = 16, 8, 128
    key = jax.random.PRNGKey(0)
    k_emb, k_cls, k_pos = jax.random.split(key, 3)

    embeddings = jax.random.normal(k_emb, (B, N, H), dtype=jnp.float32)
    # PyTorch __init__ uses zeros; use deterministic non-zero values here so the
    # broadcast/concat semantics are actually exercised.
    cls_token = 0.01 * jax.random.normal(k_cls, (1, 1, H), dtype=jnp.float32)
    position_embeddings = 0.01 * jax.random.normal(k_pos, (1, N + 1, H), dtype=jnp.float32)

    # Pure-JAX reference of the PyTorch forward.
    ref = jnp.concatenate(
        [jnp.broadcast_to(cls_token, (B, 1, H)), embeddings], axis=1
    ) + position_embeddings

    # Force the Pallas kernel path (the problem is small enough that the auto
    # dispatcher would otherwise use the XLA bypass).
    out = jax.block_until_ready(
        position_embedding(embeddings, cls_token, position_embeddings, force_kernel=True)
    )
    assert out.shape == (B, N + 1, H)
    assert jnp.allclose(out, ref, atol=1e-6, rtol=1e-6), "kernel path mismatch vs reference"

    # Auto dispatch (small-problem XLA bypass) must also match.
    out_auto = jax.block_until_ready(
        position_embedding(embeddings, cls_token, position_embeddings)
    )
    assert jnp.allclose(out_auto, ref, atol=1e-6, rtol=1e-6), "auto path mismatch vs reference"

    print("KERNEL_OK")
</pallas_src>

<mosaic_0001>
module attributes {stable_mosaic.version = 11 : i64} {
  func.func @_pos_embed_kernel(%arg0: i32, %arg1: memref<8x128xf32, #tpu.memory_space<vmem>>, %arg2: memref<1x1024xf32, #tpu.memory_space<vmem>>, %arg3: memref<8x1024xf32, #tpu.memory_space<vmem>>, %arg4: memref<8x1152xf32, #tpu.memory_space<vmem>>) attributes {dimension_semantics = [#tpu.dimension_semantics<parallel>], iteration_bounds = array<i64: 2>, scalar_prefetch = 0 : i64, scratch_operands = 0 : i64, tpu.core_type = #tpu.core_type<tc>, window_params = [{pipeline_mode = #tpu.pipeline_mode<synchronous>, transform_indices = @transform_0, window_bounds = array<i64: 8, 128>}, {pipeline_mode = #tpu.pipeline_mode<synchronous>, transform_indices = @transform_1, window_bounds = array<i64: 1, 1024>}, {transform_indices = @transform_2, window_bounds = array<i64: 8, 1024>}, {transform_indices = @transform_3, window_bounds = array<i64: 8, 1152>}]} {
    %c0 = arith.constant 0 : index
    %c0_0 = arith.constant 0 : index
    %0 = vector.load %arg1[%c0, %c0_0] : memref<8x128xf32, #tpu.memory_space<vmem>>, vector<8x128xf32>
    %c0_1 = arith.constant 0 : index
    %c0_2 = arith.constant 0 : index
    %1 = vector.load %arg4[%c0_1, %c0_2] : memref<8x1152xf32, #tpu.memory_space<vmem>>, vector<8x128xf32>
    tpu.vector_store %arg4[%c0_1, %c0_2], %0 {strides = array<i32>} : memref<8x1152xf32, #tpu.memory_space<vmem>>, vector<8x128xf32>,
    %c0_3 = arith.constant 0 : index
    %c0_4 = arith.constant 0 : index
    %2 = vector.load %arg3[%c0_3, %c0_4] : memref<8x1024xf32, #tpu.memory_space<vmem>>, vector<8x1024xf32>
    %c0_5 = arith.constant 0 : index
    %c0_6 = arith.constant 0 : index
    %3 = vector.load %arg2[%c0_5, %c0_6] : memref<1x1024xf32, #tpu.memory_space<vmem>>, vector<1x1024xf32>
    %4 = vector.broadcast %3 : vector<1x1024xf32> to vector<8x1024xf32>
    %5 = arith.addf %2, %4 : vector<8x1024xf32>
    %c0_7 = arith.constant 0 : index
    %c128 = arith.constant 128 : index
    %6 = vector.load %arg4[%c0_7, %c128] : memref<8x1152xf32, #tpu.memory_space<vmem>>, vector<8x1024xf32>
    tpu.vector_store %arg4[%c0_7, %c128], %5 {strides = array<i32>} : memref<8x1152xf32, #tpu.memory_space<vmem>>, vector<8x1024xf32>,
    return
  }
  func.func @transform_0(%arg0: i32) -> (i32, i32) {
    %c0_i32 = arith.constant 0 : i32
    %c0_i32_0 = arith.constant 0 : i32
    %c0_i32_1 = arith.constant 0 : i32
    return %c0_i32, %c0_i32_0 : i32, i32
  }
  func.func @transform_1(%arg0: i32) -> (i32, i32) {
    %c0_i32 = arith.constant 0 : i32
    %c0_i32_0 = arith.constant 0 : i32
    %c0_i32_1 = arith.constant 0 : i32
    return %c0_i32, %c0_i32_0 : i32, i32
  }
  func.func @transform_2(%arg0: i32) -> (i32, i32) {
    %c0_i32 = arith.constant 0 : i32
    %c0_i32_0 = arith.constant 0 : i32
    return %arg0, %c0_i32 : i32, i32
  }
  func.func @transform_3(%arg0: i32) -> (i32, i32) {
    %c0_i32 = arith.constant 0 : i32
    %c0_i32_0 = arith.constant 0 : i32
    return %arg0, %c0_i32 : i32, i32
  }
}

module attributes {stable_mosaic.version = 11 : i64} {
  func.func @_pos_embed_kernel(%arg0: i32, %arg1: memref<8x128xf32, #tpu.memory_space<vmem>>, %arg2: memref<1x1024xf32, #tpu.memory_space<vmem>>, %arg3: memref<8x1024xf32, #tpu.memory_space<vmem>>, %arg4: memref<8x1152xf32, #tpu.memory_space<vmem>>) attributes {dimension_semantics = [#tpu.dimension_semantics<parallel>], iteration_bounds = array<i64: 2>, scalar_prefetch = 0 : i64, scratch_operands = 0 : i64, tpu.core_type = #tpu.core_type<tc>, window_params = [{pipeline_mode = #tpu.pipeline_mode<synchronous>, transform_indices = @transform_0, window_bounds = array<i64: 8, 128>}, {pipeline_mode = #tpu.pipeline_mode<synchronous>, transform_indices = @transform_1, window_bounds = array<i64: 1, 1024>}, {transform_indices = @transform_2, window_bounds = array<i64: 8, 1024>}, {transform_indices = @transform_3, window_bounds = array<i64: 8, 1152>}]} {
    %c0 = arith.constant 0 : index
    %c0_0 = arith.constant 0 : index
    %0 = vector.load %arg1[%c0, %c0_0] : memref<8x128xf32, #tpu.memory_space<vmem>>, vector<8x128xf32>
    %c0_1 = arith.constant 0 : index
    %c0_2 = arith.constant 0 : index
    %1 = vector.load %arg4[%c0_1, %c0_2] : memref<8x1152xf32, #tpu.memory_space<vmem>>, vector<8x128xf32>
    tpu.vector_store %arg4[%c0_1, %c0_2], %0 {strides = array<i32>} : memref<8x1152xf32, #tpu.memory_space<vmem>>, vector<8x128xf32>,
    %c0_3 = arith.constant 0 : index
    %c0_4 = arith.constant 0 : index
    %2 = vector.load %arg3[%c0_3, %c0_4] : memref<8x1024xf32, #tpu.memory_space<vmem>>, vector<8x1024xf32>
    %c0_5 = arith.constant 0 : index
    %c0_6 = arith.constant 0 : index
    %3 = vector.load %arg2[%c0_5, %c0_6] : memref<1x1024xf32, #tpu.memory_space<vmem>>, vector<1x1024xf32>
    %4 = vector.broadcast %3 : vector<1x1024xf32> to vector<8x1024xf32>
    %5 = arith.addf %2, %4 : vector<8x1024xf32>
    %c0_7 = arith.constant 0 : index
    %c128 = arith.constant 128 : index
    %6 = vector.load %arg4[%c0_7, %c128] : memref<8x1152xf32, #tpu.memory_space<vmem>>, vector<8x1024xf32>
    tpu.vector_store %arg4[%c0_7, %c128], %5 {strides = array<i32>} : memref<8x1152xf32, #tpu.memory_space<vmem>>, vector<8x1024xf32>,
    return
  }
  func.func @transform_0(%arg0: i32) -> (i32, i32) {
    %c0_i32 = arith.constant 0 : i32
    %c0_i32_0 = arith.constant 0 : i32
    %c0_i32_1 = arith.constant 0 : i32
    return %c0_i32, %c0_i32_0 : i32, i32
  }
  func.func @transform_1(%arg0: i32) -> (i32, i32) {
    %c0_i32 = arith.constant 0 : i32
    %c0_i32_0 = arith.constant 0 : i32
    %c0_i32_1 = arith.constant 0 : i32
    return %c0_i32, %c0_i32_0 : i32, i32
  }
  func.func @transform_2(%arg0: i32) -> (i32, i32) {
    %c0_i32 = arith.constant 0 : i32
    %c0_i32_0 = arith.constant 0 : i32
    return %arg0, %c0_i32 : i32, i32
  }
  func.func @transform_3(%arg0: i32) -> (i32, i32) {
    %c0_i32 = arith.constant 0 : i32
    %c0_i32_0 = arith.constant 0 : i32
    return %arg0, %c0_i32 : i32, i32
  }
}

</mosaic_0001>

<llo_original>
// kernel: tpu_custom_call.1
$region0: #{tpu_custom_call.1}
  #allocation0 [shape = 'u32[]', space=smem, size = 0x4, offset = 0x4, fixed_abs, tag = 'smem constant byte address 0x4 - core index']
  #allocation1 [shape = 'u32[144,128]{1,0:T(1,128)}', space=vmem, size = 0x12000, scoped, tag = 'internal scratch']
  %s0 = inlined_call_operand.hbm [shape: f32[8,128], index: 0, kind: input, shape index: {}]
  %s1 = inlined_call_operand.hbm [shape: f32[1,1024], index: 1, kind: input, shape index: {}]
  %s2 = inlined_call_operand.hbm [shape: f32[16,1024], index: 2, kind: input, shape index: {}]
  %s3 = inlined_call_operand.hbm [shape: f32[16,1152], index: 3, kind: output, shape index: {}]
  %s4 = sld [smem:[#allocation0]]
  $region57: #{tpu_custom_call.1} parent=0
    _
  %s6 = ssub.s32 1, %s4
  %s7 = scalar_select 0, %s6, %s4
  $region1: #{tpu_custom_call.1} parent=0
    #allocation2 [shape = 'u8[4096]{0}', space=vmem, size = 0x1000, scoped, tag = 'input window, operand 0, single buffered']
    #allocation3 [shape = 's32[2]{0}', space=sflag, size = 0x8, scoped, tag = 'scoped memory for tpu_custom_call.1']
    #allocation4 [shape = 's32[2]{0}', space=sflag, size = 0x8, scoped, tag = 'scoped memory for tpu_custom_call.1']
    #allocation5 [shape = 'u8[4096]{0}', space=vmem, size = 0x1000, scoped, tag = 'input window, operand 1, single buffered']
    #allocation6 [shape = 's32[1]{0}', space=sflag, size = 0x4, scoped, tag = 'scoped memory for tpu_custom_call.1']
    #allocation7 [shape = 'u8[65536]{0}', space=vmem, size = 0x10000, scoped, tag = 'input window, operand 2']
    #allocation8 [shape = 'u8[73728]{0}', space=vmem, size = 0x12000, scoped, tag = 'output window, operand 0']
    %8 = vsyncpa [#allocation3], 0
    %9 = vsyncpa [#allocation6], 0
    %10 = vsyncpa [#allocation4], 0
    %s11 = scalar_lea.sflag [#allocation4], 1
    %12 = vsyncpa %s11, 0
    loop: start=0, step=1, limit=4
    $region2: #{tpu_custom_call.1} parent=1 // loop_pre_header
      _
    $region3: #{tpu_custom_call.1} parent=1 // loop_header
      %s14 = sphi 0, %s18
      %p15 = scmp.ge.s32.totalorder %s14, 4
      %s22 = sphi 0, %s22
      %s24 = sphi 0, %s22
      %s25 = sphi 0, %s24
      %s39 = sphi 0, %s25
      %s43 = sphi 0, %s43
      %s45 = sphi 0, %s43
      %s46 = sphi 0, %s45
      %s60 = sphi 0, %s46
      %s66 = sphi 0, %s68
      %s69 = sphi 0, %s66
      %s70 = sphi 0, %s69
      %s86 = sphi 0, %s70
      %s92 = sphi 0, %s94
      %s95 = sphi 0, %s92
      %s96 = sphi 0, %s95
      %s112 = sphi 0, %s96
    $region4: #{tpu_custom_call.1} parent=1 // loop_header_branch
      %17 = sbr.rel (%p15) target = $region8
    $region5: #{tpu_custom_call.1} parent=1 // loop_body
      %s19 = ssub.s32 %s14, 1
      %s20 = ssub.s32 %s14, 2
      %s21 = sadd.s32 %s14, 1
      %s23 = sadd.s32 %s22, 1
      %p26 = scmp.eq.s32.totalorder %s14, 1
      %p27 = scmp.ne.s32.totalorder %s22, %s24
      %p28 = scmp.eq.s32.totalorder %s14, 0
      %p29 = por %p27, %p28
      %p30 = scmp.ne.s32.totalorder %s22, %s24
      %p31 = scmp.eq.s32.totalorder %s19, 1
      %p32 = por %p30, %p31
      %p33 = scmp.ne.s32.totalorder %s24, %s25
      %p34 = scmp.eq.s32.totalorder %s19, 0
      %p35 = por %p33, %p34
      %p36 = scmp.ne.s32.totalorder %s24, %s25
      %p37 = scmp.eq.s32.totalorder %s20, 1
      %p38 = por %p36, %p37
      %p40 = scmp.ne.s32.totalorder %s25, %s39
      %p41 = scmp.eq.s32.totalorder %s20, 0
      %p42 = por %p40, %p41
      %s44 = sadd.s32 %s43, 1
      %p47 = scmp.eq.s32.totalorder %s14, 1
      %p48 = scmp.ne.s32.totalorder %s43, %s45
      %p49 = scmp.eq.s32.totalorder %s14, 0
      %p50 = por %p48, %p49
      %p51 = scmp.ne.s32.totalorder %s43, %s45
      %p52 = scmp.eq.s32.totalorder %s19, 1
      %p53 = por %p51, %p52
      %p54 = scmp.ne.s32.totalorder %s45, %s46
      %p55 = scmp.eq.s32.totalorder %s19, 0
      %p56 = por %p54, %p55
      %p57 = scmp.ne.s32.totalorder %s45, %s46
      %p58 = scmp.eq.s32.totalorder %s20, 1
      %p59 = por %p57, %p58
      %p61 = scmp.ne.s32.totalorder %s46, %s60
      %p62 = scmp.eq.s32.totalorder %s20, 0
      %p63 = por %p61, %p62
      %s64 = ssub.s32 %s14, %s21
      %p65 = scmp.eq.s32.totalorder %s64, 0
      %s67 = sadd.s32 %s66, 1
      %s68 = scalar_select %p65, %s66, %s67
      %p71 = pneg %p65
      %p72 = scmp.eq.s32.totalorder %s14, 1
      %p73 = por %p71, %p72
      %p74 = scmp.ne.s32.totalorder %s66, %s69
      %p75 = scmp.eq.s32.totalorder %s14, 0
      %p76 = por %p74, %p75
      %p77 = scmp.ne.s32.totalorder %s66, %s69
      %p78 = scmp.eq.s32.totalorder %s19, 1
      %p79 = por %p77, %p78
      %p80 = scmp.ne.s32.totalorder %s69, %s70
      %p81 = scmp.eq.s32.totalorder %s19, 0
      %p82 = por %p80, %p81
      %p83 = scmp.ne.s32.totalorder %s69, %s70
      %p84 = scmp.eq.s32.totalorder %s20, 1
      %p85 = por %p83, %p84
      %p87 = scmp.ne.s32.totalorder %s70, %s86
      %p88 = scmp.eq.s32.totalorder %s20, 0
      %p89 = por %p87, %p88
      %s90 = ssub.s32 %s14, %s21
      %p91 = scmp.eq.s32.totalorder %s90, 0
      %s93 = sadd.s32 %s92, 1
      %s94 = scalar_select %p91, %s92, %s93
      %p97 = pneg %p91
      %p98 = scmp.eq.s32.totalorder %s14, 1
      %p99 = por %p97, %p98
      %p100 = scmp.ne.s32.totalorder %s92, %s95
      %p101 = scmp.eq.s32.totalorder %s14, 0
      %p102 = por %p100, %p101
      %p103 = scmp.ne.s32.totalorder %s92, %s95
      %p104 = scmp.eq.s32.totalorder %s19, 1
      %p105 = por %p103, %p104
      %p106 = scmp.ne.s32.totalorder %s95, %s96
      %p107 = scmp.eq.s32.totalorder %s19, 0
      %p108 = por %p106, %p107
      %p109 = scmp.ne.s32.totalorder %s95, %s96
      %p110 = scmp.eq.s32.totalorder %s20, 1
      %p111 = por %p109, %p110
      %p113 = scmp.ne.s32.totalorder %s96, %s112
      %p114 = scmp.eq.s32.totalorder %s20, 0
      %p115 = por %p113, %p114
      %p116 = scmp.le.s32.totalorder 1, %s14
      %p117 = scmp.lt.s32.totalorder %s14, 3
      %p118 = pnand %p116, %p117
      %p119 = pneg %p118
      // Predicated region
      $region9: #{tpu_custom_call.1} parent=5 // pred_check
        _
      $region10: #{tpu_custom_call.1} parent=5 // pred_check_branch
        %121 = sbr.rel (%p118) target = $region12
      $region11: #{tpu_custom_call.1} parent=5 // pred_region
        %s122 = ssub.s32 %s14, 1
        // Predicated region
        $region13: #{tpu_custom_call.1} parent=11 // pred_check
          %p123 = pneg %p35
        $region14: #{tpu_custom_call.1} parent=11 // pred_check_branch
          %125 = sbr.rel (%p123) target = $region16
        $region15: #{tpu_custom_call.1} parent=11 // pred_region
          %s127 = ssub.s32 128, 128
          %128 = vsyncadd [#allocation3], %s127
          %s130 = sshll.u32 [#allocation2], 4
          %s131 = int_to_ptr.vmem [resolvable:$true] %s130
          %133 = dma.hbm_to_vmem [thread:$0]  %s0, 128, %s131, [#allocation3]
        $region16: #{tpu_custom_call.1} parent=11 // pred_fallthru
          _
        // Predicated region
        $region17: #{tpu_custom_call.1} parent=11 // pred_check
          %p134 = pneg %p56
        $region18: #{tpu_custom_call.1} parent=11 // pred_check_branch
          %136 = sbr.rel (%p134) target = $region20
        $region19: #{tpu_custom_call.1} parent=11 // pred_region
          %s138 = ssub.s32 128, 128
          %139 = vsyncadd [#allocation6], %s138
          %s141 = sshll.u32 [#allocation5], 4
          %s142 = int_to_ptr.vmem [resolvable:$true] %s141
          %144 = dma.hbm_to_vmem [thread:$0]  %s1, 128, %s142, [#allocation6]
        $region20: #{tpu_custom_call.1} parent=11 // pred_fallthru
          _
      $region12: #{tpu_custom_call.1} parent=5 // pred_fallthru
        _
      %p145 = scmp.lt.s32.totalorder %s14, 2
      // Predicated region
      $region21: #{tpu_custom_call.1} parent=5 // pred_check
        %p146 = pneg %p145
      $region22: #{tpu_custom_call.1} parent=5 // pred_check_branch
        %148 = sbr.rel (%p146) target = $region24
      $region23: #{tpu_custom_call.1} parent=5 // pred_region
        // Predicated region
        $region25: #{tpu_custom_call.1} parent=23 // pred_check
          %p149 = pneg %p76
        $region26: #{tpu_custom_call.1} parent=23 // pred_check_branch
          %151 = sbr.rel (%p149) target = $region28
        $region27: #{tpu_custom_call.1} parent=23 // pred_region
          %s152 = sand.u32 %s14, 1
          %s153 = scalar_lea.sflag [#allocation3], %s152
          %s154 = sand.u32 %s66, 1
          %s155 = smul.addr %s154, 64
          %s156 = scalar_lea.vmem [#allocation7], %s155
          %s158 = ssub.s32 1024, 1024
          %159 = vsyncadd %s153, %s158
          %s160 = smul.addr %s14, 8
          %s161 = smul.addr %s160, 128
          %s162 = scalar_lea.hbm %s2, %s161
          %s164 = sshll.u32 %s156, 4
          %s165 = int_to_ptr.vmem [resolvable:$true] %s164
          %167 = dma.hbm_to_vmem [thread:$0]  %s162, 1024, %s165, %s153
        $region28: #{tpu_custom_call.1} parent=23 // pred_fallthru
          _
      $region24: #{tpu_custom_call.1} parent=5 // pred_fallthru
        _
      %p168 = scmp.le.s32.totalorder 1, %s14
      %p169 = scmp.lt.s32.totalorder %s14, 3
      %p170 = pnand %p168, %p169
      %p171 = pneg %p170
      // Predicated region
      $region29: #{tpu_custom_call.1} parent=5 // pred_check
        _
      $region30: #{tpu_custom_call.1} parent=5 // pred_check_branch
        %173 = sbr.rel (%p170) target = $region32
      $region31: #{tpu_custom_call.1} parent=5 // pred_region
        %s174 = ssub.s32 %s14, 1
        // Predicated region
        $region33: #{tpu_custom_call.1} parent=31 // pred_check
          %p175 = pneg %p35
        $region34: #{tpu_custom_call.1} parent=31 // pred_check_branch
          %177 = sbr.rel (%p175) target = $region36
        $region35: #{tpu_custom_call.1} parent=31 // pred_region
          %178 = dma.done [#allocation3], 128
        $region36: #{tpu_custom_call.1} parent=31 // pred_fallthru
          _
        // Predicated region
        $region37: #{tpu_custom_call.1} parent=31 // pred_check
          %p179 = pneg %p56
        $region38: #{tpu_custom_call.1} parent=31 // pred_check_branch
          %181 = sbr.rel (%p179) target = $region40
        $region39: #{tpu_custom_call.1} parent=31 // pred_region
          %182 = dma.done [#allocation6], 128
        $region40: #{tpu_custom_call.1} parent=31 // pred_fallthru
          _
        %s183 = sand.u32 %s19, 1
        %s184 = scalar_lea.sflag [#allocation3], %s183
        %s185 = sand.u32 %s69, 1
        %s186 = smul.addr %s185, 64
        %s187 = scalar_lea.vmem [#allocation7], %s186
        // Predicated region
        $region41: #{tpu_custom_call.1} parent=31 // pred_check
          %p188 = pneg %p82
        $region42: #{tpu_custom_call.1} parent=31 // pred_check_branch
          %190 = sbr.rel (%p188) target = $region44
        $region43: #{tpu_custom_call.1} parent=31 // pred_region
          %191 = dma.done %s184, 1024
        $region44: #{tpu_custom_call.1} parent=31 // pred_fallthru
          _
        %p192 = pneg %p35
        %p193 = pneg %p32
        %p194 = pneg %p56
        %p195 = pneg %p53
        %s196 = sand.u32 %s19, 1
        %s197 = scalar_lea.sflag [#allocation3], %s196
        %s198 = sand.u32 %s69, 1
        %s199 = smul.addr %s198, 64
        %s200 = scalar_lea.vmem [#allocation7], %s199
        %p201 = pneg %p82
        %p202 = pneg %p79
        %p203 = pneg %p108
        %p204 = pneg %p105
        %s205 = sand.u32 %s95, 1
        %s206 = scalar_lea.sflag [#allocation4], %s205
        %s207 = sand.u32 %s95, 1
        %s208 = smul.addr %s207, 72
        %s209 = scalar_lea.vmem [#allocation8], %s208
        %v210 = vld [vmem:[#allocation2] sm:$0xff]
        %211 = vst [vmem:[%s209] sm:$0xff] %v210
        %v212 = vld [vmem:[%s187] sm:$0xff]
        %v213 = vld [vmem:[%s187 + $0x8] sm:$0xff]
        %v214 = vld [vmem:[%s187 + $0x10] sm:$0xff]
        %v215 = vld [vmem:[%s187 + $0x18] sm:$0xff]
        %v216 = vld [vmem:[%s187 + $0x20] sm:$0xff]
        %v217 = vld [vmem:[%s187 + $0x28] sm:$0xff]
        %v218 = vld [vmem:[%s187 + $0x30] sm:$0xff]
        %v219 = vld [vmem:[%s187 + $0x38] sm:$0xff]
        %v220 = vld [vmem:[#allocation5] sm:$0xff]
        %v222 = vlaneseq
        %v223 = vshrl.u32 %v222, 7
        %v224 = vsub.s32 0, %v223
        %v225 = vrot.slane %v220, %v224
        %v226 = vlaneseq
        %v227 = vshrl.u32 %v226, 7
        %v228 = vsub.s32 1, %v227
        %v229 = vrot.slane %v220, %v228
        %v230 = vlaneseq
        %v231 = vshrl.u32 %v230, 7
        %v232 = vsub.s32 2, %v231
        %v233 = vrot.slane %v220, %v232
        %v234 = vlaneseq
        %v235 = vshrl.u32 %v234, 7
        %v236 = vsub.s32 3, %v235
        %v237 = vrot.slane %v220, %v236
        %v238 = vlaneseq
        %v239 = vshrl.u32 %v238, 7
        %v240 = vsub.s32 4, %v239
        %v241 = vrot.slane %v220, %v240
        %v242 = vlaneseq
        %v243 = vshrl.u32 %v242, 7
        %v244 = vsub.s32 5, %v243
        %v245 = vrot.slane %v220, %v244
        %v246 = vlaneseq
        %v247 = vshrl.u32 %v246, 7
        %v248 = vsub.s32 6, %v247
        %v249 = vrot.slane %v220, %v248
        %v250 = vlaneseq
        %v251 = vshrl.u32 %v250, 7
        %v252 = vsub.s32 7, %v251
        %v253 = vrot.slane %v220, %v252
        %v262 = vadd.f32 %v212, %v225
        %v263 = vadd.f32 %v213, %v229
        %v264 = vadd.f32 %v214, %v233
        %v265 = vadd.f32 %v215, %v237
        %v266 = vadd.f32 %v216, %v241
        %v267 = vadd.f32 %v217, %v245
        %v268 = vadd.f32 %v218, %v249
        %v269 = vadd.f32 %v219, %v253
        %270 = vst [vmem:[%s209 + $0x8] sm:$0xff] %v262
        %271 = vst [vmem:[%s209 + $0x10] sm:$0xff] %v263
        %272 = vst [vmem:[%s209 + $0x18] sm:$0xff] %v264
        %273 = vst [vmem:[%s209 + $0x20] sm:$0xff] %v265
        %274 = vst [vmem:[%s209 + $0x28] sm:$0xff] %v266
        %275 = vst [vmem:[%s209 + $0x30] sm:$0xff] %v267
        %276 = vst [vmem:[%s209 + $0x38] sm:$0xff] %v268
        %277 = vst [vmem:[%s209 + $0x40] sm:$0xff] %v269
        %s278 = sand.u32 %s95, 1
        %s279 = scalar_lea.sflag [#allocation4], %s278
        %s280 = sand.u32 %s95, 1
        %s281 = smul.addr %s280, 72
        %s282 = scalar_lea.vmem [#allocation8], %s281
        // Predicated region
        $region45: #{tpu_custom_call.1} parent=31 // pred_check
          %p283 = pneg %p105
        $region46: #{tpu_custom_call.1} parent=31 // pred_check_branch
          %285 = sbr.rel (%p283) target = $region48
        $region47: #{tpu_custom_call.1} parent=31 // pred_region
          %s287 = ssub.s32 1152, 1152
          %288 = vsyncadd %s279, %s287
          %s289 = smul.addr %s19, 9
          %s290 = smul.addr %s289, 128
          %s291 = scalar_lea.hbm %s3, %s290
          %s293 = sshll.u32 %s282, 4
          %s294 = int_to_ptr.vmem [resolvable:$true] %s293
          %296 = dma.vmem_to_hbm [thread:$0]  %s294, 1152, %s291, %s279
        $region48: #{tpu_custom_call.1} parent=31 // pred_fallthru
          _
      $region32: #{tpu_custom_call.1} parent=5 // pred_fallthru
        _
      %p297 = scmp.le.s32.totalorder 2, %s14
      // Predicated region
      $region49: #{tpu_custom_call.1} parent=5 // pred_check
        %p298 = pneg %p297
      $region50: #{tpu_custom_call.1} parent=5 // pred_check_branch
        %300 = sbr.rel (%p298) target = $region52
      $region51: #{tpu_custom_call.1} parent=5 // pred_region
        %s301 = ssub.s32 %s14, 2
        // Predicated region
        $region53: #{tpu_custom_call.1} parent=51 // pred_check
          %p302 = pneg %p111
        $region54: #{tpu_custom_call.1} parent=51 // pred_check_branch
          %304 = sbr.rel (%p302) target = $region56
        $region55: #{tpu_custom_call.1} parent=51 // pred_region
          %s305 = sand.u32 %s96, 1
          %s306 = scalar_lea.sflag [#allocation4], %s305
          %s307 = sand.u32 %s96, 1
          %s308 = smul.addr %s307, 72
          %s309 = scalar_lea.vmem [#allocation8], %s308
          %310 = dma.done %s306, 1152
        $region56: #{tpu_custom_call.1} parent=51 // pred_fallthru
          _
      $region52: #{tpu_custom_call.1} parent=5 // pred_fallthru
        _
    $region6: #{tpu_custom_call.1} parent=1 // loop_footer
      %s18 = sadd.s32 1, %s14
    $region7: #{tpu_custom_call.1} parent=1 // loop_footer_branch
      %13 = sbr.rel target = $region3
    $region8: #{tpu_custom_call.1} parent=1 // loop_exit
      _
    %311 = vsyncpa [#allocation3], 1
    %s312 = scalar_lea.sflag [#allocation3], 1
    %313 = vsyncpa %s312, 1
    %314 = vsyncpa [#allocation6], 1
    %315 = vsyncpa [#allocation4], 1
    %s316 = scalar_lea.sflag [#allocation4], 1
    %317 = vsyncpa %s316, 1

// kernel: tpu_custom_call.1
$region0: #{tpu_custom_call.1}
  #allocation0 [shape = 'u32[]', space=smem, size = 0x4, offset = 0x4, fixed_abs, tag = 'smem constant byte address 0x4 - core index']
  #allocation1 [shape = 'u32[144,128]{1,0:T(1,128)}', space=vmem, size = 0x12000, scoped, tag = 'internal scratch']
  %s0 = inlined_call_operand.hbm [shape: f32[8,128], index: 0, kind: input, shape index: {}]
  %s1 = inlined_call_operand.hbm [shape: f32[1,1024], index: 1, kind: input, shape index: {}]
  %s2 = inlined_call_operand.hbm [shape: f32[16,1024], index: 2, kind: input, shape index: {}]
  %s3 = inlined_call_operand.hbm [shape: f32[16,1152], index: 3, kind: output, shape index: {}]
  %s4 = sld [smem:[#allocation0]]
  $region57: #{tpu_custom_call.1} parent=0
    _
  %s6 = ssub.s32 1, %s4
  %s7 = scalar_select 0, %s6, %s4
  $region1: #{tpu_custom_call.1} parent=0
    #allocation2 [shape = 'u8[4096]{0}', space=vmem, size = 0x1000, scoped, tag = 'input window, operand 0, single buffered']
    #allocation3 [shape = 's32[2]{0}', space=sflag, size = 0x8, scoped, tag = 'scoped memory for tpu_custom_call.1']
    #allocation4 [shape = 's32[2]{0}', space=sflag, size = 0x8, scoped, tag = 'scoped memory for tpu_custom_call.1']
    #allocation5 [shape = 'u8[4096]{0}', space=vmem, size = 0x1000, scoped, tag = 'input window, operand 1, single buffered']
    #allocation6 [shape = 's32[1]{0}', space=sflag, size = 0x4, scoped, tag = 'scoped memory for tpu_custom_call.1']
    #allocation7 [shape = 'u8[65536]{0}', space=vmem, size = 0x10000, scoped, tag = 'input window, operand 2']
    #allocation8 [shape = 'u8[73728]{0}', space=vmem, size = 0x12000, scoped, tag = 'output window, operand 0']
    %8 = vsyncpa [#allocation3], 0
    %9 = vsyncpa [#allocation6], 0
    %10 = vsyncpa [#allocation4], 0
    %s11 = scalar_lea.sflag [#allocation4], 1
    %12 = vsyncpa %s11, 0
    loop: start=0, step=1, limit=4
    $region2: #{tpu_custom_call.1} parent=1 // loop_pre_header
      _
    $region3: #{tpu_custom_call.1} parent=1 // loop_header
      %s14 = sphi 0, %s18
      %p15 = scmp.ge.s32.totalorder %s14, 4
      %s22 = sphi 0, %s22
      %s24 = sphi 0, %s22
      %s25 = sphi 0, %s24
      %s39 = sphi 0, %s25
      %s43 = sphi 0, %s43
      %s45 = sphi 0, %s43
      %s46 = sphi 0, %s45
      %s60 = sphi 0, %s46
      %s66 = sphi 0, %s68
      %s69 = sphi 0, %s66
      %s70 = sphi 0, %s69
      %s86 = sphi 0, %s70
      %s92 = sphi 0, %s94
      %s95 = sphi 0, %s92
      %s96 = sphi 0, %s95
      %s112 = sphi 0, %s96
    $region4: #{tpu_custom_call.1} parent=1 // loop_header_branch
      %17 = sbr.rel (%p15) target = $region8
    $region5: #{tpu_custom_call.1} parent=1 // loop_body
      %s19 = ssub.s32 %s14, 1
      %s20 = ssub.s32 %s14, 2
      %s21 = sadd.s32 %s14, 1
      %s23 = sadd.s32 %s22, 1
      %p26 = scmp.eq.s32.totalorder %s14, 1
      %p27 = scmp.ne.s32.totalorder %s22, %s24
      %p28 = scmp.eq.s32.totalorder %s14, 0
      %p29 = por %p27, %p28
      %p30 = scmp.ne.s32.totalorder %s22, %s24
      %p31 = scmp.eq.s32.totalorder %s19, 1
      %p32 = por %p30, %p31
      %p33 = scmp.ne.s32.totalorder %s24, %s25
      %p34 = scmp.eq.s32.totalorder %s19, 0
      %p35 = por %p33, %p34
      %p36 = scmp.ne.s32.totalorder %s24, %s25
      %p37 = scmp.eq.s32.totalorder %s20, 1
      %p38 = por %p36, %p37
      %p40 = scmp.ne.s32.totalorder %s25, %s39
      %p41 = scmp.eq.s32.totalorder %s20, 0
      %p42 = por %p40, %p41
      %s44 = sadd.s32 %s43, 1
      %p47 = scmp.eq.s32.totalorder %s14, 1
      %p48 = scmp.ne.s32.totalorder %s43, %s45
      %p49 = scmp.eq.s32.totalorder %s14, 0
      %p50 = por %p48, %p49
      %p51 = scmp.ne.s32.totalorder %s43, %s45
      %p52 = scmp.eq.s32.totalorder %s19, 1
      %p53 = por %p51, %p52
      %p54 = scmp.ne.s32.totalorder %s45, %s46
      %p55 = scmp.eq.s32.totalorder %s19, 0
      %p56 = por %p54, %p55
      %p57 = scmp.ne.s32.totalorder %s45, %s46
      %p58 = scmp.eq.s32.totalorder %s20, 1
      %p59 = por %p57, %p58
      %p61 = scmp.ne.s32.totalorder %s46, %s60
      %p62 = scmp.eq.s32.totalorder %s20, 0
      %p63 = por %p61, %p62
      %s64 = ssub.s32 %s14, %s21
      %p65 = scmp.eq.s32.totalorder %s64, 0
      %s67 = sadd.s32 %s66, 1
      %s68 = scalar_select %p65, %s66, %s67
      %p71 = pneg %p65
      %p72 = scmp.eq.s32.totalorder %s14, 1
      %p73 = por %p71, %p72
      %p74 = scmp.ne.s32.totalorder %s66, %s69
      %p75 = scmp.eq.s32.totalorder %s14, 0
      %p76 = por %p74, %p75
      %p77 = scmp.ne.s32.totalorder %s66, %s69
      %p78 = scmp.eq.s32.totalorder %s19, 1
      %p79 = por %p77, %p78
      %p80 = scmp.ne.s32.totalorder %s69, %s70
      %p81 = scmp.eq.s32.totalorder %s19, 0
      %p82 = por %p80, %p81
      %p83 = scmp.ne.s32.totalorder %s69, %s70
      %p84 = scmp.eq.s32.totalorder %s20, 1
      %p85 = por %p83, %p84
      %p87 = scmp.ne.s32.totalorder %s70, %s86
      %p88 = scmp.eq.s32.totalorder %s20, 0
      %p89 = por %p87, %p88
      %s90 = ssub.s32 %s14, %s21
      %p91 = scmp.eq.s32.totalorder %s90, 0
      %s93 = sadd.s32 %s92, 1
      %s94 = scalar_select %p91, %s92, %s93
      %p97 = pneg %p91
      %p98 = scmp.eq.s32.totalorder %s14, 1
      %p99 = por %p97, %p98
      %p100 = scmp.ne.s32.totalorder %s92, %s95
      %p101 = scmp.eq.s32.totalorder %s14, 0
      %p102 = por %p100, %p101
      %p103 = scmp.ne.s32.totalorder %s92, %s95
      %p104 = scmp.eq.s32.totalorder %s19, 1
      %p105 = por %p103, %p104
      %p106 = scmp.ne.s32.totalorder %s95, %s96
      %p107 = scmp.eq.s32.totalorder %s19, 0
      %p108 = por %p106, %p107
      %p109 = scmp.ne.s32.totalorder %s95, %s96
      %p110 = scmp.eq.s32.totalorder %s20, 1
      %p111 = por %p109, %p110
      %p113 = scmp.ne.s32.totalorder %s96, %s112
      %p114 = scmp.eq.s32.totalorder %s20, 0
      %p115 = por %p113, %p114
      %p116 = scmp.le.s32.totalorder 1, %s14
      %p117 = scmp.lt.s32.totalorder %s14, 3
      %p118 = pnand %p116, %p117
      %p119 = pneg %p118
      // Predicated region
      $region9: #{tpu_custom_call.1} parent=5 // pred_check
        _
      $region10: #{tpu_custom_call.1} parent=5 // pred_check_branch
        %121 = sbr.rel (%p118) target = $region12
      $region11: #{tpu_custom_call.1} parent=5 // pred_region
        %s122 = ssub.s32 %s14, 1
        // Predicated region
        $region13: #{tpu_custom_call.1} parent=11 // pred_check
          %p123 = pneg %p35
        $region14: #{tpu_custom_call.1} parent=11 // pred_check_branch
          %125 = sbr.rel (%p123) target = $region16
        $region15: #{tpu_custom_call.1} parent=11 // pred_region
          %s127 = ssub.s32 128, 128
          %128 = vsyncadd [#allocation3], %s127
          %s130 = sshll.u32 [#allocation2], 4
          %s131 = int_to_ptr.vmem [resolvable:$true] %s130
          %133 = dma.hbm_to_vmem [thread:$0]  %s0, 128, %s131, [#allocation3]
        $region16: #{tpu_custom_call.1} parent=11 // pred_fallthru
          _
        // Predicated region
        $region17: #{tpu_custom_call.1} parent=11 // pred_check
          %p134 = pneg %p56
        $region18: #{tpu_custom_call.1} parent=11 // pred_check_branch
          %136 = sbr.rel (%p134) target = $region20
        $region19: #{tpu_custom_call.1} parent=11 // pred_region
          %s138 = ssub.s32 128, 128
          %139 = vsyncadd [#allocation6], %s138
          %s141 = sshll.u32 [#allocation5], 4
          %s142 = int_to_ptr.vmem [resolvable:$true] %s141
          %144 = dma.hbm_to_vmem [thread:$0]  %s1, 128, %s142, [#allocation6]
        $region20: #{tpu_custom_call.1} parent=11 // pred_fallthru
          _
      $region12: #{tpu_custom_call.1} parent=5 // pred_fallthru
        _
      %p145 = scmp.lt.s32.totalorder %s14, 2
      // Predicated region
      $region21: #{tpu_custom_call.1} parent=5 // pred_check
        %p146 = pneg %p145
      $region22: #{tpu_custom_call.1} parent=5 // pred_check_branch
        %148 = sbr.rel (%p146) target = $region24
      $region23: #{tpu_custom_call.1} parent=5 // pred_region
        // Predicated region
        $region25: #{tpu_custom_call.1} parent=23 // pred_check
          %p149 = pneg %p76
        $region26: #{tpu_custom_call.1} parent=23 // pred_check_branch
          %151 = sbr.rel (%p149) target = $region28
        $region27: #{tpu_custom_call.1} parent=23 // pred_region
          %s152 = sand.u32 %s14, 1
          %s153 = scalar_lea.sflag [#allocation3], %s152
          %s154 = sand.u32 %s66, 1
          %s155 = smul.addr %s154, 64
          %s156 = scalar_lea.vmem [#allocation7], %s155
          %s158 = ssub.s32 1024, 1024
          %159 = vsyncadd %s153, %s158
          %s160 = smul.addr %s14, 8
          %s161 = smul.addr %s160, 128
          %s162 = scalar_lea.hbm %s2, %s161
          %s164 = sshll.u32 %s156, 4
          %s165 = int_to_ptr.vmem [resolvable:$true] %s164
          %167 = dma.hbm_to_vmem [thread:$0]  %s162, 1024, %s165, %s153
        $region28: #{tpu_custom_call.1} parent=23 // pred_fallthru
          _
      $region24: #{tpu_custom_call.1} parent=5 // pred_fallthru
        _
      %p168 = scmp.le.s32.totalorder 1, %s14
      %p169 = scmp.lt.s32.totalorder %s14, 3
      %p170 = pnand %p168, %p169
      %p171 = pneg %p170
      // Predicated region
      $region29: #{tpu_custom_call.1} parent=5 // pred_check
        _
      $region30: #{tpu_custom_call.1} parent=5 // pred_check_branch
        %173 = sbr.rel (%p170) target = $region32
      $region31: #{tpu_custom_call.1} parent=5 // pred_region
        %s174 = ssub.s32 %s14, 1
        // Predicated region
        $region33: #{tpu_custom_call.1} parent=31 // pred_check
          %p175 = pneg %p35
        $region34: #{tpu_custom_call.1} parent=31 // pred_check_branch
          %177 = sbr.rel (%p175) target = $region36
        $region35: #{tpu_custom_call.1} parent=31 // pred_region
          %178 = dma.done [#allocation3], 128
        $region36: #{tpu_custom_call.1} parent=31 // pred_fallthru
          _
        // Predicated region
        $region37: #{tpu_custom_call.1} parent=31 // pred_check
          %p179 = pneg %p56
        $region38: #{tpu_custom_call.1} parent=31 // pred_check_branch
          %181 = sbr.rel (%p179) target = $region40
        $region39: #{tpu_custom_call.1} parent=31 // pred_region
          %182 = dma.done [#allocation6], 128
        $region40: #{tpu_custom_call.1} parent=31 // pred_fallthru
          _
        %s183 = sand.u32 %s19, 1
        %s184 = scalar_lea.sflag [#allocation3], %s183
        %s185 = sand.u32 %s69, 1
        %s186 = smul.addr %s185, 64
        %s187 = scalar_lea.vmem [#allocation7], %s186
        // Predicated region
        $region41: #{tpu_custom_call.1} parent=31 // pred_check
          %p188 = pneg %p82
        $region42: #{tpu_custom_call.1} parent=31 // pred_check_branch
          %190 = sbr.rel (%p188) target = $region44
        $region43: #{tpu_custom_call.1} parent=31 // pred_region
          %191 = dma.done %s184, 1024
        $region44: #{tpu_custom_call.1} parent=31 // pred_fallthru
          _
        %p192 = pneg %p35
        %p193 = pneg %p32
        %p194 = pneg %p56
        %p195 = pneg %p53
        %s196 = sand.u32 %s19, 1
        %s197 = scalar_lea.sflag [#allocation3], %s196
        %s198 = sand.u32 %s69, 1
        %s199 = smul.addr %s198, 64
        %s200 = scalar_lea.vmem [#allocation7], %s199
        %p201 = pneg %p82
        %p202 = pneg %p79
        %p203 = pneg %p108
        %p204 = pneg %p105
        %s205 = sand.u32 %s95, 1
        %s206 = scalar_lea.sflag [#allocation4], %s205
        %s207 = sand.u32 %s95, 1
        %s208 = smul.addr %s207, 72
        %s209 = scalar_lea.vmem [#allocation8], %s208
        %v210 = vld [vmem:[#allocation2] sm:$0xff]
        %211 = vst [vmem:[%s209] sm:$0xff] %v210
        %v212 = vld [vmem:[%s187] sm:$0xff]
        %v213 = vld [vmem:[%s187 + $0x8] sm:$0xff]
        %v214 = vld [vmem:[%s187 + $0x10] sm:$0xff]
        %v215 = vld [vmem:[%s187 + $0x18] sm:$0xff]
        %v216 = vld [vmem:[%s187 + $0x20] sm:$0xff]
        %v217 = vld [vmem:[%s187 + $0x28] sm:$0xff]
        %v218 = vld [vmem:[%s187 + $0x30] sm:$0xff]
        %v219 = vld [vmem:[%s187 + $0x38] sm:$0xff]
        %v220 = vld [vmem:[#allocation5] sm:$0xff]
        %v222 = vlaneseq
        %v223 = vshrl.u32 %v222, 7
        %v224 = vsub.s32 0, %v223
        %v225 = vrot.slane %v220, %v224
        %v226 = vlaneseq
        %v227 = vshrl.u32 %v226, 7
        %v228 = vsub.s32 1, %v227
        %v229 = vrot.slane %v220, %v228
        %v230 = vlaneseq
        %v231 = vshrl.u32 %v230, 7
        %v232 = vsub.s32 2, %v231
        %v233 = vrot.slane %v220, %v232
        %v234 = vlaneseq
        %v235 = vshrl.u32 %v234, 7
        %v236 = vsub.s32 3, %v235
        %v237 = vrot.slane %v220, %v236
        %v238 = vlaneseq
        %v239 = vshrl.u32 %v238, 7
        %v240 = vsub.s32 4, %v239
        %v241 = vrot.slane %v220, %v240
        %v242 = vlaneseq
        %v243 = vshrl.u32 %v242, 7
        %v244 = vsub.s32 5, %v243
        %v245 = vrot.slane %v220, %v244
        %v246 = vlaneseq
        %v247 = vshrl.u32 %v246, 7
        %v248 = vsub.s32 6, %v247
        %v249 = vrot.slane %v220, %v248
        %v250 = vlaneseq
        %v251 = vshrl.u32 %v250, 7
        %v252 = vsub.s32 7, %v251
        %v253 = vrot.slane %v220, %v252
        %v262 = vadd.f32 %v212, %v225
        %v263 = vadd.f32 %v213, %v229
        %v264 = vadd.f32 %v214, %v233
        %v265 = vadd.f32 %v215, %v237
        %v266 = vadd.f32 %v216, %v241
        %v267 = vadd.f32 %v217, %v245
        %v268 = vadd.f32 %v218, %v249
        %v269 = vadd.f32 %v219, %v253
        %270 = vst [vmem:[%s209 + $0x8] sm:$0xff] %v262
        %271 = vst [vmem:[%s209 + $0x10] sm:$0xff] %v263
        %272 = vst [vmem:[%s209 + $0x18] sm:$0xff] %v264
        %273 = vst [vmem:[%s209 + $0x20] sm:$0xff] %v265
        %274 = vst [vmem:[%s209 + $0x28] sm:$0xff] %v266
        %275 = vst [vmem:[%s209 + $0x30] sm:$0xff] %v267
        %276 = vst [vmem:[%s209 + $0x38] sm:$0xff] %v268
        %277 = vst [vmem:[%s209 + $0x40] sm:$0xff] %v269
        %s278 = sand.u32 %s95, 1
        %s279 = scalar_lea.sflag [#allocation4], %s278
        %s280 = sand.u32 %s95, 1
        %s281 = smul.addr %s280, 72
        %s282 = scalar_lea.vmem [#allocation8], %s281
        // Predicated region
        $region45: #{tpu_custom_call.1} parent=31 // pred_check
          %p283 = pneg %p105
        $region46: #{tpu_custom_call.1} parent=31 // pred_check_branch
          %285 = sbr.rel (%p283) target = $region48
        $region47: #{tpu_custom_call.1} parent=31 // pred_region
          %s287 = ssub.s32 1152, 1152
          %288 = vsyncadd %s279, %s287
          %s289 = smul.addr %s19, 9
          %s290 = smul.addr %s289, 128
          %s291 = scalar_lea.hbm %s3, %s290
          %s293 = sshll.u32 %s282, 4
          %s294 = int_to_ptr.vmem [resolvable:$true] %s293
          %296 = dma.vmem_to_hbm [thread:$0]  %s294, 1152, %s291, %s279
        $region48: #{tpu_custom_call.1} parent=31 // pred_fallthru
          _
      $region32: #{tpu_custom_call.1} parent=5 // pred_fallthru
        _
      %p297 = scmp.le.s32.totalorder 2, %s14
      // Predicated region
      $region49: #{tpu_custom_call.1} parent=5 // pred_check
        %p298 = pneg %p297
      $region50: #{tpu_custom_call.1} parent=5 // pred_check_branch
        %300 = sbr.rel (%p298) target = $region52
      $region51: #{tpu_custom_call.1} parent=5 // pred_region
        %s301 = ssub.s32 %s14, 2
        // Predicated region
        $region53: #{tpu_custom_call.1} parent=51 // pred_check
          %p302 = pneg %p111
        $region54: #{tpu_custom_call.1} parent=51 // pred_check_branch
          %304 = sbr.rel (%p302) target = $region56
        $region55: #{tpu_custom_call.1} parent=51 // pred_region
          %s305 = sand.u32 %s96, 1
          %s306 = scalar_lea.sflag [#allocation4], %s305
          %s307 = sand.u32 %s96, 1
          %s308 = smul.addr %s307, 72
          %s309 = scalar_lea.vmem [#allocation8], %s308
          %310 = dma.done %s306, 1152
        $region56: #{tpu_custom_call.1} parent=51 // pred_fallthru
          _
      $region52: #{tpu_custom_call.1} parent=5 // pred_fallthru
        _
    $region6: #{tpu_custom_call.1} parent=1 // loop_footer
      %s18 = sadd.s32 1, %s14
    $region7: #{tpu_custom_call.1} parent=1 // loop_footer_branch
      %13 = sbr.rel target = $region3
    $region8: #{tpu_custom_call.1} parent=1 // loop_exit
      _
    %311 = vsyncpa [#allocation3], 1
    %s312 = scalar_lea.sflag [#allocation3], 1
    %313 = vsyncpa %s312, 1
    %314 = vsyncpa [#allocation6], 1
    %315 = vsyncpa [#allocation4], 1
    %s316 = scalar_lea.sflag [#allocation4], 1
    %317 = vsyncpa %s316, 1

</llo_original>
